<compile_context>
chip_gen: v5e
topology: v5e:2x2
jax: 0.10.0
libtpu: 0.0.40
codegen_flags: <defaults>
</compile_context>

<pallas_src>
import functools

import jax
import jax.numpy as jnp
from jax.experimental import pallas as pl
from jax.experimental.pallas import tpu as pltpu

_NEG = -1e30  # finite "-inf" stand-in: exp() underflows to 0, masked picks stay finite.


def _round_up(x: int, m: int) -> int:
    return (x + m - 1) // m * m


def _loss_decoder_kernel(ce_scale, mse_scale,
                         cat_ref, tgt_ref, cp_ref, ct_ref, out_ref):
    """One batch tile -> one fully-scaled partial loss scalar (independent per grid step)."""
    # --- categorical cross-entropy, all categories at once --------------------------------
    # Single bulk f32 cast right after load (v5e has no bf16 VPU/EUP path).
    logits = cat_ref[...].astype(jnp.float32)                   # (C, TB, V_pad)
    tgt = tgt_ref[...]                                           # (C, TB, 1) int32

    m = jnp.max(logits, axis=-1, keepdims=True)                  # per-category, per-row max
    lse = m + jnp.log(jnp.sum(jnp.exp(logits - m), axis=-1, keepdims=True))
    cls = jax.lax.broadcasted_iota(jnp.int32, logits.shape, 2)   # ONE iota, hoisted over cats
    picked = jnp.sum(jnp.where(cls == tgt, logits, 0.0), axis=-1, keepdims=True)
    ce_part = jnp.sum(lse - picked)                              # raw sum over tile

    # --- continuous squared error ----------------------------------------------------------
    diff = cp_ref[...].astype(jnp.float32) - ct_ref[...].astype(jnp.float32)
    sq_part = jnp.sum(diff * diff)

    # All /B, /num_cats, /D_cont, /B normalizations folded into two constant multiplies.
    out_ref[0, 0] = ce_part * jnp.float32(ce_scale) + sq_part * jnp.float32(mse_scale)


def loss_decoder(cat_dict, cat_preds, cat_targets, cont_preds, cont_targets,
                 *, vmem_budget_bytes=32 << 20):
    """Pallas wrapper. Returns an array of shape (1,), matching the torch module."""
    cat_sizes = tuple(int(v) for v in cat_dict.values())
    num_cats = len(cat_sizes)
    B = cat_preds.shape[0]
    d_cont = cont_preds.shape[1]
    assert cat_preds.shape == (B, sum(cat_sizes))
    assert cat_targets.shape == (B, num_cats)
    assert cont_targets.shape == (B, d_cont)

    v_pad = _round_up(max(cat_sizes), 128)      # lane-dense last dim for the logits slab
    d_pad = _round_up(d_cont, 128)              # lane-dense last dim for continuous features

    cat_dtype = cat_preds.dtype                                  # keep bf16 if given
    cont_dtype = jnp.promote_types(cont_preds.dtype, cont_targets.dtype)

    # --- batch tile sized for the smallest VMEM (v7x: 64 MiB physical), double-buffered ----
    bytes_per_row = (num_cats * v_pad * jnp.dtype(cat_dtype).itemsize
                     + num_cats * 128 * 4                        # int32 targets, lane-padded
                     + 2 * d_pad * jnp.dtype(cont_dtype).itemsize)
    tb = vmem_budget_bytes // (2 * max(bytes_per_row, 1))
    tb = max(8, min(2048, (tb // 8) * 8))
    tb = min(tb, _round_up(B, 8))
    b_pad = _round_up(B, tb)
    n_tiles = b_pad // tb

    # --- host-side layout plumbing: lane-dense per-category slab ---------------------------
    blocks, pos = [], 0
    for v in cat_sizes:
        blk = cat_preds[:, pos:pos + v]
        blk = jnp.pad(blk, ((0, 0), (0, v_pad - v)), constant_values=_NEG)
        blocks.append(blk)
        pos += v
    cat3 = jnp.stack(blocks, axis=0)                             # (C, B, v_pad)
    if b_pad > B:
        # pad rows contribute exactly 0 to CE: column 0 = 0.0, rest = -1e30, target = 0
        pad = jnp.full((num_cats, b_pad - B, v_pad), _NEG, cat3.dtype)
        pad = pad.at[:, :, 0].set(jnp.zeros((), cat3.dtype))
        cat3 = jnp.concatenate([cat3, pad], axis=1)

    tgt3 = jnp.transpose(cat_targets.astype(jnp.int32))[:, :, None]   # (C, B, 1)
    if b_pad > B:
        tgt3 = jnp.pad(tgt3, ((0, 0), (0, b_pad - B), (0, 0)))

    cp = jnp.pad(cont_preds.astype(cont_dtype), ((0, b_pad - B), (0, d_pad - d_cont)))
    ct = jnp.pad(cont_targets.astype(cont_dtype), ((0, b_pad - B), (0, d_pad - d_cont)))

    # Compile-time normalization constants (use true B / d_cont; padding contributes 0).
    ce_scale = 1.0 / (float(B) * float(num_cats) * float(B))
    mse_scale = 1.0 / (float(B) * float(d_cont) * float(d_cont) * float(B))

    kernel = functools.partial(_loss_decoder_kernel, ce_scale, mse_scale)
    partials = pl.pallas_call(
        kernel,
        out_shape=jax.ShapeDtypeStruct((n_tiles, 1), jnp.float32),
        grid_spec=pltpu.PrefetchScalarGridSpec(
            num_scalar_prefetch=0,
            grid=(n_tiles,),
            in_specs=[
                pl.BlockSpec((num_cats, tb, v_pad), lambda b: (0, b, 0)),
                pl.BlockSpec((num_cats, tb, 1), lambda b: (0, b, 0)),
                pl.BlockSpec((tb, d_pad), lambda b: (b, 0)),
                pl.BlockSpec((tb, d_pad), lambda b: (b, 0)),
            ],
            out_specs=pl.BlockSpec((1, 1), lambda b: (b, 0),
                                   memory_space=pltpu.MemorySpace.SMEM),
        ),
        compiler_params=pltpu.CompilerParams(
            dimension_semantics=("parallel",),         # independent per-tile partials
            vmem_limit_bytes=48 * 1024 * 1024,
        ),
    )(cat3, tgt3, cp, ct)
    # Tiny (n_tiles,) combine outside the kernel; scales are linear so summing is exact.
    return jnp.sum(partials).reshape(1)


def _reference(cat_dict, cat_preds, cat_targets, cont_preds, cont_targets):
    """Pure-JAX reference mirroring the PyTorch forward."""
    B = cat_preds.shape[0]
    ce = jnp.float32(0.0)
    pos = 0
    for i, v in enumerate(cat_dict.values()):
        logits = cat_preds[:, pos:pos + v].astype(jnp.float32)
        logp = jax.nn.log_softmax(logits, axis=-1)
        picked = jnp.take_along_axis(logp, cat_targets[:, i:i + 1].astype(jnp.int32), axis=-1)
        ce = ce + (-jnp.mean(picked))
        pos += v
    cat_loss = ce / len(cat_dict)
    cont_loss = jnp.mean((cont_preds.astype(jnp.float32)
                          - cont_targets.astype(jnp.float32)) ** 2) / cont_targets.shape[1]
    return (cat_loss + cont_loss) / B


if __name__ == "__main__":
    # Small, deterministic example consistent with the module's forward.
    cat_dict = {"cat_a": 4, "cat_b": 3, "cat_c": 5}   # category -> num classes
    B = 8
    D_CONT = 6
    total_cat_logits = sum(cat_dict.values())          # 12

    key = jax.random.PRNGKey(0)
    k1, k2, k3, k4 = jax.random.split(key, 4)

    cat_preds = jax.random.normal(k1, (B, total_cat_logits), dtype=jnp.float32)
    tgt_cols = []
    for j, (_, v) in enumerate(cat_dict.items()):
        kj = jax.random.fold_in(k2, j)
        tgt_cols.append(jax.random.randint(kj, (B, 1), 0, v, dtype=jnp.int32))
    cat_targets = jnp.concatenate(tgt_cols, axis=1)
    cont_preds = jax.random.normal(k3, (B, D_CONT), dtype=jnp.float32)
    cont_targets = jax.random.normal(k4, (B, D_CONT), dtype=jnp.float32)

    out = loss_decoder(cat_dict, cat_preds, cat_targets, cont_preds, cont_targets)
    out = jax.block_until_ready(out)

    ref = _reference(cat_dict, cat_preds, cat_targets, cont_preds, cont_targets)
    assert out.shape == (1,)
    assert jnp.allclose(out[0], ref, rtol=1e-5, atol=1e-5), (out, ref)

    print("KERNEL_OK")
</pallas_src>

<mosaic_0001>
module attributes {stable_mosaic.version = 11 : i64} {
  func.func @_loss_decoder_kernel(%arg0: i32, %arg1: memref<3x8x128xf32, #tpu.memory_space<vmem>>, %arg2: memref<3x8x1xi32, #tpu.memory_space<vmem>>, %arg3: memref<8x128xf32, #tpu.memory_space<vmem>>, %arg4: memref<8x128xf32, #tpu.memory_space<vmem>>, %arg5: memref<1x1xf32, #tpu.memory_space<smem>>) attributes {dimension_semantics = [#tpu.dimension_semantics<parallel>], iteration_bounds = array<i64: 1>, scalar_prefetch = 0 : i64, scratch_operands = 0 : i64, tpu.core_type = #tpu.core_type<tc>, window_params = [{transform_indices = @transform_0, window_bounds = array<i64: 3, 8, 128>}, {transform_indices = @transform_1, window_bounds = array<i64: 3, 8, 1>}, {transform_indices = @transform_2, window_bounds = array<i64: 8, 128>}, {transform_indices = @transform_3, window_bounds = array<i64: 8, 128>}, {transform_indices = @transform_4, window_bounds = array<i64: 1, 1>}]} {
    %c0 = arith.constant 0 : index
    %c0_0 = arith.constant 0 : index
    %c0_1 = arith.constant 0 : index
    %0 = vector.load %arg1[%c0, %c0_0, %c0_1] : memref<3x8x128xf32, #tpu.memory_space<vmem>>, vector<3x8x128xf32>
    %c0_2 = arith.constant 0 : index
    %c0_3 = arith.constant 0 : index
    %c0_4 = arith.constant 0 : index
    %1 = vector.load %arg2[%c0_2, %c0_3, %c0_4] : memref<3x8x1xi32, #tpu.memory_space<vmem>>, vector<3x8x1xi32>
    %cst = arith.constant dense<0xFF800000> : vector<3x8xf32>
    %2 = vector.multi_reduction <maximumf>, %0, %cst [2] : vector<3x8x128xf32> to vector<3x8xf32>
    %3 = vector.shape_cast %2 : vector<3x8xf32> to vector<3x8x1xf32>
    %4 = vector.broadcast %3 : vector<3x8x1xf32> to vector<3x8x128xf32>
    %5 = arith.subf %0, %4 : vector<3x8x128xf32>
    %6 = math.exp %5 : vector<3x8x128xf32>
    %cst_5 = arith.constant dense<0.000000e+00> : vector<3x8xf32>
    %7 = vector.multi_reduction <add>, %6, %cst_5 [2] : vector<3x8x128xf32> to vector<3x8xf32>
    %8 = vector.shape_cast %7 : vector<3x8xf32> to vector<3x8x1xf32>
    %9 = math.log %8 : vector<3x8x1xf32>
    %10 = arith.addf %3, %9 : vector<3x8x1xf32>
    %11 = tpu.iota {dimensions = array<i32: 2>} : vector<3x8x128xi32>
    %12 = vector.broadcast %1 : vector<3x8x1xi32> to vector<3x8x128xi32>
    %13 = arith.cmpi eq, %11, %12 : vector<3x8x128xi32>
    %cst_6 = arith.constant 0.000000e+00 : f32
    %14 = vector.broadcast %cst_6 : f32 to vector<3x8x128xf32>
    %15 = arith.select %13, %0, %14 : vector<3x8x128xi1>, vector<3x8x128xf32>
    %cst_7 = arith.constant dense<0.000000e+00> : vector<3x8xf32>
    %16 = vector.multi_reduction <add>, %15, %cst_7 [2] : vector<3x8x128xf32> to vector<3x8xf32>
    %17 = vector.shape_cast %16 : vector<3x8xf32> to vector<3x8x1xf32>
    %18 = arith.subf %10, %17 : vector<3x8x1xf32>
    %19 = vector.shape_cast %18 : vector<3x8x1xf32> to vector<1x3x8x1xf32>
    %cst_8 = arith.constant dense<0.000000e+00> : vector<1xf32>
    %20 = vector.multi_reduction <add>, %19, %cst_8 [1, 2, 3] : vector<1x3x8x1xf32> to vector<1xf32>
    %21 = vector.shape_cast %20 : vector<1xf32> to vector<1x1x1x1xf32>
    %22 = vector.extract %21[0, 0, 0, 0] : f32 from vector<1x1x1x1xf32>
    %c0_9 = arith.constant 0 : index
    %c0_10 = arith.constant 0 : index
    %23 = vector.load %arg3[%c0_9, %c0_10] : memref<8x128xf32, #tpu.memory_space<vmem>>, vector<8x128xf32>
    %c0_11 = arith.constant 0 : index
    %c0_12 = arith.constant 0 : index
    %24 = vector.load %arg4[%c0_11, %c0_12] : memref<8x128xf32, #tpu.memory_space<vmem>>, vector<8x128xf32>
    %25 = arith.subf %23, %24 : vector<8x128xf32>
    %26 = arith.mulf %25, %25 : vector<8x128xf32>
    %27 = vector.shape_cast %26 : vector<8x128xf32> to vector<1x8x128xf32>
    %cst_13 = arith.constant dense<0.000000e+00> : vector<1xf32>
    %28 = vector.multi_reduction <add>, %27, %cst_13 [1, 2] : vector<1x8x128xf32> to vector<1xf32>
    %29 = vector.shape_cast %28 : vector<1xf32> to vector<1x1x1xf32>
    %30 = vector.extract %29[0, 0, 0] : f32 from vector<1x1x1xf32>
    %cst_14 = arith.constant 0.00520833349 : f32
    %31 = arith.mulf %22, %cst_14 : f32
    %cst_15 = arith.constant 4.34027781E-4 : f32
    %32 = arith.mulf %30, %cst_15 : f32
    %33 = arith.addf %31, %32 : f32
    %c0_16 = arith.constant 0 : index
    %c0_17 = arith.constant 0 : index
    %34 = memref.load %arg5[%c0_16, %c0_17] : memref<1x1xf32, #tpu.memory_space<smem>>
    memref.store %33, %arg5[%c0_16, %c0_17] : memref<1x1xf32, #tpu.memory_space<smem>>
    return
  }
  func.func @transform_0(%arg0: i32) -> (i32, i32, i32) {
    %c0_i32 = arith.constant 0 : i32
    %c0_i32_0 = arith.constant 0 : i32
    %c0_i32_1 = arith.constant 0 : i32
    return %c0_i32, %arg0, %c0_i32_0 : i32, i32, i32
  }
  func.func @transform_1(%arg0: i32) -> (i32, i32, i32) {
    %c0_i32 = arith.constant 0 : i32
    %c0_i32_0 = arith.constant 0 : i32
    %c0_i32_1 = arith.constant 0 : i32
    return %c0_i32, %arg0, %c0_i32_0 : i32, i32, i32
  }
  func.func @transform_2(%arg0: i32) -> (i32, i32) {
    %c0_i32 = arith.constant 0 : i32
    %c0_i32_0 = arith.constant 0 : i32
    return %arg0, %c0_i32 : i32, i32
  }
  func.func @transform_3(%arg0: i32) -> (i32, i32) {
    %c0_i32 = arith.constant 0 : i32
    %c0_i32_0 = arith.constant 0 : i32
    return %arg0, %c0_i32 : i32, i32
  }
  func.func @transform_4(%arg0: i32) -> (i32, i32) {
    %c0_i32 = arith.constant 0 : i32
    %c0_i32_0 = arith.constant 0 : i32
    return %arg0, %c0_i32 : i32, i32
  }
}

</mosaic_0001>

<llo_original>
// kernel: tpu_custom_call.1
$region0: #{tpu_custom_call.1}
  #allocation0 [shape = 'u32[]', space=smem, size = 0x4, offset = 0x4, fixed_abs, tag = 'smem constant byte address 0x4 - core index']
  #allocation1 [shape = 'u32[72,128]{1,0:T(1,128)}', space=vmem, size = 0x9000, scoped, tag = 'internal scratch']
  %s0 = inlined_call_operand.vmem [shape: f32[3,8,128], index: 0, kind: input, shape index: {}]
  %s1 = inlined_call_operand.vmem [shape: s32[3,8,1], index: 1, kind: input, shape index: {}]
  %s2 = inlined_call_operand.hbm [shape: f32[8,128], index: 2, kind: input, shape index: {}]
  %s3 = inlined_call_operand.hbm [shape: f32[8,128], index: 3, kind: input, shape index: {}]
  %s4 = inlined_call_operand.hbm [shape: f32[1,1], index: 4, kind: output, shape index: {}]
  %s5 = sld [smem:[#allocation0]]
  $region34: #{tpu_custom_call.1} parent=0
    _
  %s7 = ssub.s32 1, %s5
  %s8 = scalar_select 0, %s7, %s5
  $region1: #{tpu_custom_call.1} parent=0
    #allocation2 [shape = 'u8[4096]{0}', space=vmem, size = 0x1000, scoped, tag = 'input window, operand 2, single buffered']
    #allocation3 [shape = 's32[1]{0}', space=sflag, size = 0x4, scoped, tag = 'scoped memory for tpu_custom_call.1']
    #allocation4 [shape = 's32[1]{0}', space=sflag, size = 0x4, scoped, tag = 'scoped memory for tpu_custom_call.1']
    #allocation5 [shape = 'u8[4096]{0}', space=vmem, size = 0x1000, scoped, tag = 'input window, operand 3, single buffered']
    #allocation6 [shape = 's32[1]{0}', space=sflag, size = 0x4, scoped, tag = 'scoped memory for tpu_custom_call.1']
    #allocation7 [shape = 'u8[512]{0}', space=smem, size = 0x200, scoped, tag = 'output window, operand 0, single buffered']
    %9 = vsyncpa [#allocation3], 0
    %10 = vsyncpa [#allocation6], 0
    %11 = vsyncpa [#allocation4], 0
    // Predicated region
    $region2: #{tpu_custom_call.1} parent=1 // pred_check
      _
    $region3: #{tpu_custom_call.1} parent=1 // pred_check_branch
      %13 = sbr.rel (0) target = $region5
    $region4: #{tpu_custom_call.1} parent=1 // pred_region
      _
    $region5: #{tpu_custom_call.1} parent=1 // pred_fallthru
      _
    // Predicated region
    $region6: #{tpu_custom_call.1} parent=1 // pred_check
      _
    $region7: #{tpu_custom_call.1} parent=1 // pred_check_branch
      %15 = sbr.rel (0) target = $region9
    $region8: #{tpu_custom_call.1} parent=1 // pred_region
      _
    $region9: #{tpu_custom_call.1} parent=1 // pred_fallthru
      _
    // Predicated region
    $region10: #{tpu_custom_call.1} parent=1 // pred_check
      _
    $region11: #{tpu_custom_call.1} parent=1 // pred_check_branch
      %17 = sbr.rel (0) target = $region13
    $region12: #{tpu_custom_call.1} parent=1 // pred_region
      %19 = vsyncadd [#allocation3], 0
      %s21 = sshll.u32 %s2, 4
      %s22 = int_to_ptr.hbm [resolvable:$true] %s21
      %s23 = sshll.u32 [#allocation2], 4
      %s24 = int_to_ptr.vmem [resolvable:$true] %s23
      %26 = dma.hbm_to_vmem [thread:$0]  %s22, 128, %s24, [#allocation3]
    $region13: #{tpu_custom_call.1} parent=1 // pred_fallthru
      _
    // Predicated region
    $region14: #{tpu_custom_call.1} parent=1 // pred_check
      _
    $region15: #{tpu_custom_call.1} parent=1 // pred_check_branch
      %28 = sbr.rel (0) target = $region17
    $region16: #{tpu_custom_call.1} parent=1 // pred_region
      %30 = vsyncadd [#allocation6], 0
      %s32 = sshll.u32 %s3, 4
      %s33 = int_to_ptr.hbm [resolvable:$true] %s32
      %s34 = sshll.u32 [#allocation5], 4
      %s35 = int_to_ptr.vmem [resolvable:$true] %s34
      %37 = dma.hbm_to_vmem [thread:$0]  %s33, 128, %s35, [#allocation6]
    $region17: #{tpu_custom_call.1} parent=1 // pred_fallthru
      _
    // Predicated region
    $region18: #{tpu_custom_call.1} parent=1 // pred_check
      _
    $region19: #{tpu_custom_call.1} parent=1 // pred_check_branch
      %39 = sbr.rel (0) target = $region21
    $region20: #{tpu_custom_call.1} parent=1 // pred_region
      %41 = dma.done [#allocation3], 128
    $region21: #{tpu_custom_call.1} parent=1 // pred_fallthru
      _
    // Predicated region
    $region22: #{tpu_custom_call.1} parent=1 // pred_check
      _
    $region23: #{tpu_custom_call.1} parent=1 // pred_check_branch
      %43 = sbr.rel (0) target = $region25
    $region24: #{tpu_custom_call.1} parent=1 // pred_region
      %45 = dma.done [#allocation6], 128
    $region25: #{tpu_custom_call.1} parent=1 // pred_fallthru
      _
    %v46 = vld [vmem:[%s0] sm:$0xff]
    %v47 = vld [vmem:[%s0 + $0x8] sm:$0xff]
    %v48 = vld [vmem:[%s0 + $0x10] sm:$0xff]
    %v49 = vld [vmem:[%s1] sm:$0xff]
    %v50 = vld [vmem:[%s1 + $0x8] sm:$0xff]
    %v51 = vld [vmem:[%s1 + $0x10] sm:$0xff]
    %52 = vmax.xlane.f32.xlu0 %v46
    %v53 = vpop.xlane.xlu0 %52
    %54 = vmax.xlane.f32.xlu0 %v47
    %v55 = vpop.xlane.xlu0 %54
    %56 = vmax.xlane.f32.xlu0 %v48
    %v57 = vpop.xlane.xlu0 %56
    %v58 = vsub.f32 %v46, %v53
    %v59 = vsub.f32 %v47, %v55
    %v60 = vsub.f32 %v48, %v57
    %v61 = vmul.f32 %v58, 1.442695
    %v62 = vpow.pop %v61
    %v63 = vmul.f32 %v59, 1.442695
    %v64 = vpow.pop %v63
    %v65 = vmul.f32 %v60, 1.442695
    %v66 = vpow.pop %v65
    %67 = vadd.xlane.f32.xlu0 %v62
    %v68 = vpop.xlane.xlu0 %67
    %69 = vadd.xlane.f32.xlu0 %v64
    %v70 = vpop.xlane.xlu0 %69
    %71 = vadd.xlane.f32.xlu0 %v66
    %v72 = vpop.xlane.xlu0 %71
    %v73 = vlog2.pop %v68
    %v74 = vmul.f32 %v73, 0.6931472
    %v75 = vlog2.pop %v70
    %v76 = vmul.f32 %v75, 0.6931472
    %v77 = vlog2.pop %v72
    %v78 = vmul.f32 %v77, 0.6931472
    %v79 = vadd.f32 %v53, %v74
    %v80 = vadd.f32 %v55, %v76
    %v81 = vadd.f32 %v57, %v78
    %v82 = vlaneseq
    %v83 = vand.u32 %v82, 127
    %84 = vset.pattern.permute.xlu0 0
    %85 = vperm.xlu0 %84, %v49
    %v86 = vpop.permute.xlu0 %85
    %87 = vset.pattern.permute.xlu0 0
    %88 = vperm.xlu0 %87, %v50
    %v89 = vpop.permute.xlu0 %88
    %90 = vset.pattern.permute.xlu0 0
    %91 = vperm.xlu0 %90, %v51
    %v92 = vpop.permute.xlu0 %91
    %vm93 = vcmp.eq.s32.totalorder %v83, %v86
    %vm94 = vcmp.eq.s32.totalorder %v83, %v89
    %vm95 = vcmp.eq.s32.totalorder %v83, %v92
    %v96 = vsel %vm93, %v46, 0.0
    %v97 = vsel %vm94, %v47, 0.0
    %v98 = vsel %vm95, %v48, 0.0
    %99 = vadd.xlane.f32.xlu0 %v96
    %v100 = vpop.xlane.xlu0 %99
    %101 = vadd.xlane.f32.xlu0 %v97
    %v102 = vpop.xlane.xlu0 %101
    %103 = vadd.xlane.f32.xlu0 %v98
    %v104 = vpop.xlane.xlu0 %103
    %v105 = vsub.f32 %v79, %v100
    %v106 = vsub.f32 %v80, %v102
    %v107 = vsub.f32 %v81, %v104
    %vm108 = vcmask 7168
    %v109 = vsel %vm108, %v105, 0.0
    %v110 = vsel %vm108, %v106, 0.0
    %v111 = vadd.f32 %v109, %v110
    %v112 = vsel %vm108, %v107, 0.0
    %v113 = vadd.f32 %v111, %v112
    %114 = vadd.xlane.f32.xlu0 %v113
    %v115 = vpop.xlane.xlu0 %114
    %v116 = vrot.slane %v115, 4
    %v117 = vadd.f32 %v115, %v116
    %v118 = vrot.slane %v117, 2
    %v119 = vadd.f32 %v117, %v118
    %v120 = vrot.slane %v119, 1
    %v121 = vadd.f32 %v119, %v120
    %s122 = vtos %v121
    %v123 = vld [vmem:[#allocation2] sm:$0xff]
    %v124 = vld [vmem:[#allocation5] sm:$0xff]
    %v125 = vsub.f32 %v123, %v124
    %v126 = vmul.f32 %v125, %v125
    %127 = vadd.xlane.f32.xlu0 %v126
    %v128 = vpop.xlane.xlu0 %127
    %v129 = vrot.slane %v128, 4
    %v130 = vadd.f32 %v128, %v129
    %v131 = vrot.slane %v130, 2
    %v132 = vadd.f32 %v130, %v131
    %v133 = vrot.slane %v132, 1
    %v134 = vadd.f32 %v132, %v133
    %s135 = vtos %v134
    %s136 = smul.f32 %s122, 0.0052083335
    %s137 = smul.f32 %s135, 0.00043402778
    %s138 = sadd.f32 %s136, %s137
    %s139 = scalar_lea.smem [#allocation7], 0
    %140 = sst [smem:[%s139]] %s138
    // Predicated region
    $region26: #{tpu_custom_call.1} parent=1 // pred_check
      _
    $region27: #{tpu_custom_call.1} parent=1 // pred_check_branch
      %142 = sbr.rel (0) target = $region29
    $region28: #{tpu_custom_call.1} parent=1 // pred_region
      %144 = vsyncadd [#allocation4], 0
      %s146 = sshll.u32 %s4, 4
      %s147 = int_to_ptr.hbm [resolvable:$true] %s146
      %149 = dma.smem_to_hbm [#allocation7], 16, %s147, [#allocation4]
    $region29: #{tpu_custom_call.1} parent=1 // pred_fallthru
      _
    // Predicated region
    $region30: #{tpu_custom_call.1} parent=1 // pred_check
      _
    $region31: #{tpu_custom_call.1} parent=1 // pred_check_branch
      %151 = sbr.rel (0) target = $region33
    $region32: #{tpu_custom_call.1} parent=1 // pred_region
      %153 = dma.done [#allocation4], 16
    $region33: #{tpu_custom_call.1} parent=1 // pred_fallthru
      _
    %154 = sfence
    %155 = vsyncpa [#allocation3], 1
    %156 = vsyncpa [#allocation6], 1
    %157 = vsyncpa [#allocation4], 1

</llo_original>
